<compile_context>
chip_gen: v7x
topology: tpu7x:2x2x1
jax: 0.10.0
libtpu: 0.0.40
codegen_flags: <defaults>
</compile_context>

<pallas_src>
import math
from functools import partial

import numpy as np
import jax
import jax.numpy as jnp
from jax import lax
from jax.experimental import pallas as pl
from jax.experimental.pallas import tpu as pltpu


def _gelu_conv_gn_kernel(x_ref, wk_ref, bias_ref, gamma_ref, beta_ref,
                         oh_ref, oht_ref, o_ref,
                         *, Bt, H, W, Cin, Cout, groups, eps,
                         mxu_bf16, approximate_gelu):
    """One grid step processes Bt batch elements.

    x_ref:     (Bt, H, 3*(W+2)*Cin)  im2col-over-ky input, lane = ky*(W+2)*Cin + w*Cin + c
    wk_ref:    (3*(W+2)*Cin, W*Cout) banded conv weights (kx + ky folded in)
    bias_ref:  (1, W*Cout)           conv bias, tiled along W
    gamma_ref: (1, W*Cout)           GroupNorm scale, tiled along W
    beta_ref:  (1, W*Cout)           GroupNorm shift, tiled along W
    oh_ref:    (W*Cout, groups)      lane -> group one-hot
    oht_ref:   (groups, W*Cout)      its transpose
    o_ref:     (Bt, H, W*Cout)       lane-dense output, lane = w*Cout + co
    """
    WC = W * Cout
    K3 = 3 * (W + 2) * Cin
    cpg = Cout // groups

    # ---- 3x3 conv: single banded MXU matmul, K = 3*(W+2)*Cin ---------------
    mxu_dtype = jnp.bfloat16 if mxu_bf16 else jnp.float32
    patch = x_ref[...].reshape(Bt * H, K3).astype(mxu_dtype)
    acc = jnp.dot(patch, wk_ref[...].astype(mxu_dtype),
                  preferred_element_type=jnp.float32)
    acc = acc + bias_ref[...].astype(jnp.float32)            # (Bt*H, WC)

    # ---- GroupNorm over (H, W, channels-in-group) per (batch, group) -------
    acc3 = acc.reshape(Bt, H, WC)
    count = jnp.float32(H * W * cpg)
    onehot = oh_ref[...].astype(jnp.float32)                 # (WC, G)
    onehot_t = oht_ref[...].astype(jnp.float32)              # (G, WC)

    col_sum = jnp.sum(acc3, axis=1)                                  # (Bt, WC)
    mean_g = jnp.dot(col_sum, onehot,
                     preferred_element_type=jnp.float32) / count     # (Bt, G)
    mean_l = jnp.dot(mean_g, onehot_t,
                     preferred_element_type=jnp.float32)             # (Bt, WC)

    centered = acc3 - mean_l[:, None, :]
    sq_sum = jnp.sum(centered * centered, axis=1)                    # (Bt, WC)
    var_g = jnp.dot(sq_sum, onehot,
                    preferred_element_type=jnp.float32) / count      # (Bt, G)
    rstd_l = jnp.dot(lax.rsqrt(var_g + eps), onehot_t,
                     preferred_element_type=jnp.float32)             # (Bt, WC)

    y = centered * rstd_l[:, None, :] * gamma_ref[...].astype(jnp.float32) \
        + beta_ref[...].astype(jnp.float32)

    # ---- GELU ---------------------------------------------------------------
    if approximate_gelu:
        # tanh approximation: transcendental issues on the EUP slot (co-issues).
        y = jax.nn.gelu(y, approximate=True)
    else:
        # exact erf, matching torch.nn.GELU() default numerics.
        y = 0.5 * y * (1.0 + lax.erf(y * (1.0 / math.sqrt(2.0))))

    o_ref[...] = y.astype(o_ref.dtype)


def _auto_batch_block(N, H):
    """Largest divisor of N with Bt*H ~<= 256 that keeps >= 2 grid steps."""
    target = max(1, 256 // max(H, 1))
    best = 1
    for d in range(1, N + 1):
        if N % d != 0 or d > target:
            continue
        if (N // d >= 2) or N == 1:
            best = d
    return best


@partial(jax.jit, static_argnames=("groups", "eps", "batch_block",
                                   "mxu_bf16", "approximate_gelu"))
def gelu_conv_block(x_nchw, w, b, gamma, beta, *, groups, eps=1e-5,
                    batch_block=None, mxu_bf16=False, approximate_gelu=False):
    """x_nchw: (N, Cin, H, W); w: (Cout, Cin, 3, 3); b/gamma/beta: (Cout,)."""
    N, Cin, H, W = x_nchw.shape
    Cout = w.shape[0]
    assert Cout % groups == 0
    Bt = batch_block if batch_block is not None else _auto_batch_block(N, H)
    assert N % Bt == 0
    WC = W * Cout
    Kdim = (W + 2) * Cin
    K3 = 3 * Kdim
    cpg = Cout // groups

    # ---- glue: NCHW -> im2col-over-ky (N, H, 3*(W+2)*Cin) ------------------
    x_nhwc = jnp.transpose(x_nchw, (0, 2, 3, 1))
    x_pad = jnp.pad(x_nhwc, ((0, 0), (1, 1), (1, 1), (0, 0)))
    xp2 = x_pad.reshape(N, H + 2, Kdim)
    x3 = jnp.concatenate([xp2[:, ky:ky + H, :] for ky in range(3)], axis=-1)

    # ---- banded weights: wk[ky*Kdim + wi*Cin + c, wo*Cout + co]
    #                        = w[co, c, ky, wi - wo]   (wi = padded column) ---
    w_t = jnp.transpose(w, (2, 3, 1, 0)).astype(jnp.float32)   # (3,3,Cin,Cout)
    sel = np.zeros((3, W + 2, W), np.float32)
    for kx in range(3):
        sel[kx, np.arange(W) + kx, np.arange(W)] = 1.0
    wk = jnp.einsum("kiw,ykcf->yicwf", jnp.asarray(sel), w_t)
    wk = wk.reshape(K3, WC)

    # per-lane (w*Cout+co) tiled bias / affine params
    bias_l = jnp.tile(b, W).reshape(1, WC)
    gamma_l = jnp.tile(gamma, W).reshape(1, WC)
    beta_l = jnp.tile(beta, W).reshape(1, WC)

    # lane -> group one-hot (constant inputs; avoids per-step iota/compare)
    co_of_lane = np.tile(np.arange(Cout), W)
    oh = (co_of_lane[:, None] // cpg ==
          np.arange(groups)[None, :]).astype(np.float32)
    oh = jnp.asarray(oh)                                       # (WC, G)
    oht = oh.T                                                 # (G, WC)

    # ---- explicit VMEM budget: double-buffered blocks + wk + f32 temps -----
    f32 = 4
    est = (2 * Bt * H * K3 * f32        # x block (double-buffered)
           + 2 * Bt * H * WC * f32      # out block (double-buffered)
           + 2 * K3 * WC * f32          # wk (double-buffered, loop-invariant)
           + 5 * Bt * H * WC * f32      # acc/centered/sq/y temporaries
           + (1 << 20))                 # small params + slack
    vmem_limit = int(min(max(2 * est, 16 * 2**20), 48 * 2**20))

    kernel = partial(_gelu_conv_gn_kernel, Bt=Bt, H=H, W=W, Cin=Cin,
                     Cout=Cout, groups=groups, eps=eps,
                     mxu_bf16=mxu_bf16, approximate_gelu=approximate_gelu)

    out = pl.pallas_call(
        kernel,
        out_shape=jax.ShapeDtypeStruct((N, H, WC), x_nchw.dtype),
        grid_spec=pltpu.PrefetchScalarGridSpec(
            num_scalar_prefetch=0,
            grid=(N // Bt,),
            in_specs=[
                pl.BlockSpec((Bt, H, K3), lambda n: (n, 0, 0)),
                pl.BlockSpec((K3, WC), lambda n: (0, 0)),
                pl.BlockSpec((1, WC), lambda n: (0, 0)),
                pl.BlockSpec((1, WC), lambda n: (0, 0)),
                pl.BlockSpec((1, WC), lambda n: (0, 0)),
                pl.BlockSpec((WC, groups), lambda n: (0, 0)),
                pl.BlockSpec((groups, WC), lambda n: (0, 0)),
            ],
            out_specs=pl.BlockSpec((Bt, H, WC), lambda n: (n, 0, 0)),
        ),
        compiler_params=pltpu.CompilerParams(
            dimension_semantics=("parallel",),
            vmem_limit_bytes=vmem_limit),
    )(x3, wk, bias_l, gamma_l, beta_l, oh, oht)

    # ---- glue: (N, H, W*Cout) -> NCHW to match PyTorch output layout -------
    return jnp.transpose(out.reshape(N, H, W, Cout), (0, 3, 1, 2))


def _reference(x_nchw, w, b, gamma, beta, *, groups, eps=1e-5):
    """Pure-JAX reference (NCHW, mirrors PyTorch semantics)."""
    y = lax.conv_general_dilated(
        x_nchw.astype(jnp.float32), w.astype(jnp.float32),
        window_strides=(1, 1), padding=((1, 1), (1, 1)),
        dimension_numbers=("NCHW", "OIHW", "NCHW"))
    y = y + b.reshape(1, -1, 1, 1)
    N, C, H, W = y.shape
    yg = y.reshape(N, groups, C // groups, H, W)
    mean = jnp.mean(yg, axis=(2, 3, 4), keepdims=True)
    var = jnp.var(yg, axis=(2, 3, 4), keepdims=True)
    yg = (yg - mean) * lax.rsqrt(var + eps)
    y = yg.reshape(N, C, H, W) * gamma.reshape(1, -1, 1, 1) + beta.reshape(1, -1, 1, 1)
    return 0.5 * y * (1.0 + lax.erf(y / math.sqrt(2.0)))


if __name__ == "__main__":
    # shapes consistent with GELUConvBlock(in_ch=4, out_ch=8, group_size=2)
    N, Cin, H, W = 2, 4, 16, 16
    Cout, groups = 8, 2

    key = jax.random.PRNGKey(0)
    k_x, k_w, k_b, k_g, k_be = jax.random.split(key, 5)

    x = jax.random.normal(k_x, (N, Cin, H, W), dtype=jnp.float32)
    fan_in = Cin * 3 * 3
    bound = 1.0 / math.sqrt(fan_in)
    w = jax.random.uniform(k_w, (Cout, Cin, 3, 3), jnp.float32, -bound, bound)
    b = jax.random.uniform(k_b, (Cout,), jnp.float32, -bound, bound)
    gamma = 1.0 + 0.1 * jax.random.normal(k_g, (Cout,), jnp.float32)
    beta = 0.1 * jax.random.normal(k_be, (Cout,), jnp.float32)

    out = gelu_conv_block(x, w, b, gamma, beta, groups=groups)
    out = jax.block_until_ready(out)

    ref = _reference(x, w, b, gamma, beta, groups=groups)
    assert out.shape == (N, Cout, H, W)
    err = float(jnp.max(jnp.abs(out - ref)))
    assert jnp.allclose(out, ref, atol=1e-4, rtol=1e-4), err

    print("KERNEL_OK")
</pallas_src>

<mosaic_0001>
module attributes {stable_mosaic.version = 11 : i64} {
  func.func @_gelu_conv_gn_kernel(%arg0: i32, %arg1: memref<1x16x216xf32, #tpu.memory_space<vmem>>, %arg2: memref<216x128xf32, #tpu.memory_space<vmem>>, %arg3: memref<1x128xf32, #tpu.memory_space<vmem>>, %arg4: memref<1x128xf32, #tpu.memory_space<vmem>>, %arg5: memref<1x128xf32, #tpu.memory_space<vmem>>, %arg6: memref<128x2xf32, #tpu.memory_space<vmem>>, %arg7: memref<2x128xf32, #tpu.memory_space<vmem>>, %arg8: memref<1x16x128xf32, #tpu.memory_space<vmem>>) attributes {dimension_semantics = [#tpu.dimension_semantics<parallel>], iteration_bounds = array<i64: 2>, scalar_prefetch = 0 : i64, scratch_operands = 0 : i64, tpu.core_type = #tpu.core_type<tc>, window_params = [{transform_indices = @transform_0, window_bounds = array<i64: 1, 16, 216>}, {pipeline_mode = #tpu.pipeline_mode<synchronous>, transform_indices = @transform_1, window_bounds = array<i64: 216, 128>}, {pipeline_mode = #tpu.pipeline_mode<synchronous>, transform_indices = @transform_2, window_bounds = array<i64: 1, 128>}, {pipeline_mode = #tpu.pipeline_mode<synchronous>, transform_indices = @transform_3, window_bounds = array<i64: 1, 128>}, {pipeline_mode = #tpu.pipeline_mode<synchronous>, transform_indices = @transform_4, window_bounds = array<i64: 1, 128>}, {pipeline_mode = #tpu.pipeline_mode<synchronous>, transform_indices = @transform_5, window_bounds = array<i64: 128, 2>}, {pipeline_mode = #tpu.pipeline_mode<synchronous>, transform_indices = @transform_6, window_bounds = array<i64: 2, 128>}, {transform_indices = @transform_7, window_bounds = array<i64: 1, 16, 128>}]} {
    %c0 = arith.constant 0 : index
    %c0_0 = arith.constant 0 : index
    %c0_1 = arith.constant 0 : index
    %0 = vector.load %arg1[%c0, %c0_0, %c0_1] : memref<1x16x216xf32, #tpu.memory_space<vmem>>, vector<1x16x216xf32>
    %1 = vector.shape_cast %0 : vector<1x16x216xf32> to vector<16x216xf32>
    %c0_2 = arith.constant 0 : index
    %c0_3 = arith.constant 0 : index
    %2 = vector.load %arg2[%c0_2, %c0_3] : memref<216x128xf32, #tpu.memory_space<vmem>>, vector<216x128xf32>
    %cst = arith.constant dense<0.000000e+00> : vector<16x128xf32>
    %3 = tpu.matmul %1, %2, %cst {dimension_numbers = #tpu.dot_dimension_numbers<[1], [0], [0], [1], [0, 0, 1, 1], [], []>} : vector<16x216xf32>, vector<216x128xf32>, vector<16x128xf32> -> vector<16x128xf32>
    %c0_4 = arith.constant 0 : index
    %c0_5 = arith.constant 0 : index
    %4 = vector.load %arg3[%c0_4, %c0_5] : memref<1x128xf32, #tpu.memory_space<vmem>>, vector<1x128xf32>
    %5 = vector.broadcast %4 : vector<1x128xf32> to vector<16x128xf32>
    %6 = arith.addf %3, %5 : vector<16x128xf32>
    %7 = vector.shape_cast %6 : vector<16x128xf32> to vector<1x16x128xf32>
    %c0_6 = arith.constant 0 : index
    %c0_7 = arith.constant 0 : index
    %8 = vector.load %arg6[%c0_6, %c0_7] : memref<128x2xf32, #tpu.memory_space<vmem>>, vector<128x2xf32>
    %c0_8 = arith.constant 0 : index
    %c0_9 = arith.constant 0 : index
    %9 = vector.load %arg7[%c0_8, %c0_9] : memref<2x128xf32, #tpu.memory_space<vmem>>, vector<2x128xf32>
    %cst_10 = arith.constant dense<0.000000e+00> : vector<1x128xf32>
    %10 = vector.multi_reduction <add>, %7, %cst_10 [1] : vector<1x16x128xf32> to vector<1x128xf32>
    %cst_11 = arith.constant dense<0.000000e+00> : vector<1x2xf32>
    %11 = tpu.matmul %10, %8, %cst_11 {dimension_numbers = #tpu.dot_dimension_numbers<[1], [0], [0], [1], [0, 0, 1, 1], [], []>} : vector<1x128xf32>, vector<128x2xf32>, vector<1x2xf32> -> vector<1x2xf32>
    %cst_12 = arith.constant 1.024000e+03 : f32
    %12 = vector.broadcast %cst_12 : f32 to vector<1x2xf32>
    %13 = arith.divf %11, %12 : vector<1x2xf32>
    %cst_13 = arith.constant dense<0.000000e+00> : vector<1x128xf32>
    %14 = tpu.matmul %13, %9, %cst_13 {dimension_numbers = #tpu.dot_dimension_numbers<[1], [0], [0], [1], [0, 0, 1, 1], [], []>} : vector<1x2xf32>, vector<2x128xf32>, vector<1x128xf32> -> vector<1x128xf32>
    %15 = vector.shape_cast %14 : vector<1x128xf32> to vector<1x1x128xf32>
    %16 = vector.broadcast %15 : vector<1x1x128xf32> to vector<1x16x128xf32>
    %17 = arith.subf %7, %16 : vector<1x16x128xf32>
    %18 = arith.mulf %17, %17 : vector<1x16x128xf32>
    %cst_14 = arith.constant dense<0.000000e+00> : vector<1x128xf32>
    %19 = vector.multi_reduction <add>, %18, %cst_14 [1] : vector<1x16x128xf32> to vector<1x128xf32>
    %cst_15 = arith.constant dense<0.000000e+00> : vector<1x2xf32>
    %20 = tpu.matmul %19, %8, %cst_15 {dimension_numbers = #tpu.dot_dimension_numbers<[1], [0], [0], [1], [0, 0, 1, 1], [], []>} : vector<1x128xf32>, vector<128x2xf32>, vector<1x2xf32> -> vector<1x2xf32>
    %cst_16 = arith.constant 1.024000e+03 : f32
    %21 = vector.broadcast %cst_16 : f32 to vector<1x2xf32>
    %22 = arith.divf %20, %21 : vector<1x2xf32>
    %cst_17 = arith.constant 9.99999974E-6 : f32
    %23 = vector.broadcast %cst_17 : f32 to vector<1x2xf32>
    %24 = arith.addf %22, %23 : vector<1x2xf32>
    %25 = math.rsqrt %24 : vector<1x2xf32>
    %cst_18 = arith.constant dense<0.000000e+00> : vector<1x128xf32>
    %26 = tpu.matmul %25, %9, %cst_18 {dimension_numbers = #tpu.dot_dimension_numbers<[1], [0], [0], [1], [0, 0, 1, 1], [], []>} : vector<1x2xf32>, vector<2x128xf32>, vector<1x128xf32> -> vector<1x128xf32>
    %27 = vector.shape_cast %26 : vector<1x128xf32> to vector<1x1x128xf32>
    %28 = vector.broadcast %27 : vector<1x1x128xf32> to vector<1x16x128xf32>
    %29 = arith.mulf %17, %28 : vector<1x16x128xf32>
    %c0_19 = arith.constant 0 : index
    %c0_20 = arith.constant 0 : index
    %30 = vector.load %arg4[%c0_19, %c0_20] : memref<1x128xf32, #tpu.memory_space<vmem>>, vector<1x128xf32>
    %31 = vector.shape_cast %30 : vector<1x128xf32> to vector<1x1x128xf32>
    %32 = vector.broadcast %31 : vector<1x1x128xf32> to vector<1x16x128xf32>
    %33 = arith.mulf %29, %32 : vector<1x16x128xf32>
    %c0_21 = arith.constant 0 : index
    %c0_22 = arith.constant 0 : index
    %34 = vector.load %arg5[%c0_21, %c0_22] : memref<1x128xf32, #tpu.memory_space<vmem>>, vector<1x128xf32>
    %35 = vector.shape_cast %34 : vector<1x128xf32> to vector<1x1x128xf32>
    %36 = vector.broadcast %35 : vector<1x1x128xf32> to vector<1x16x128xf32>
    %37 = arith.addf %33, %36 : vector<1x16x128xf32>
    %cst_23 = arith.constant 5.000000e-01 : f32
    %38 = vector.broadcast %cst_23 : f32 to vector<1x16x128xf32>
    %39 = arith.mulf %38, %37 : vector<1x16x128xf32>
    %cst_24 = arith.constant 0.707106769 : f32
    %40 = vector.broadcast %cst_24 : f32 to vector<1x16x128xf32>
    %41 = arith.mulf %37, %40 : vector<1x16x128xf32>
    %42 = math.erf %41 : vector<1x16x128xf32>
    %cst_25 = arith.constant 1.000000e+00 : f32
    %43 = vector.broadcast %cst_25 : f32 to vector<1x16x128xf32>
    %44 = arith.addf %43, %42 : vector<1x16x128xf32>
    %45 = arith.mulf %39, %44 : vector<1x16x128xf32>
    %c0_26 = arith.constant 0 : index
    %c0_27 = arith.constant 0 : index
    %c0_28 = arith.constant 0 : index
    %46 = vector.load %arg8[%c0_26, %c0_27, %c0_28] : memref<1x16x128xf32, #tpu.memory_space<vmem>>, vector<1x16x128xf32>
    tpu.vector_store %arg8[%c0_26, %c0_27, %c0_28], %45 {strides = array<i32>} : memref<1x16x128xf32, #tpu.memory_space<vmem>>, vector<1x16x128xf32>,
    return
  }
  func.func @transform_0(%arg0: i32) -> (i32, i32, i32) {
    %c0_i32 = arith.constant 0 : i32
    %c0_i32_0 = arith.constant 0 : i32
    %c0_i32_1 = arith.constant 0 : i32
    return %arg0, %c0_i32, %c0_i32_0 : i32, i32, i32
  }
  func.func @transform_1(%arg0: i32) -> (i32, i32) {
    %c0_i32 = arith.constant 0 : i32
    %c0_i32_0 = arith.constant 0 : i32
    %c0_i32_1 = arith.constant 0 : i32
    return %c0_i32, %c0_i32_0 : i32, i32
  }
  func.func @transform_2(%arg0: i32) -> (i32, i32) {
    %c0_i32 = arith.constant 0 : i32
    %c0_i32_0 = arith.constant 0 : i32
    %c0_i32_1 = arith.constant 0 : i32
    return %c0_i32, %c0_i32_0 : i32, i32
  }
  func.func @transform_3(%arg0: i32) -> (i32, i32) {
    %c0_i32 = arith.constant 0 : i32
    %c0_i32_0 = arith.constant 0 : i32
    %c0_i32_1 = arith.constant 0 : i32
    return %c0_i32, %c0_i32_0 : i32, i32
  }
  func.func @transform_4(%arg0: i32) -> (i32, i32) {
    %c0_i32 = arith.constant 0 : i32
    %c0_i32_0 = arith.constant 0 : i32
    %c0_i32_1 = arith.constant 0 : i32
    return %c0_i32, %c0_i32_0 : i32, i32
  }
  func.func @transform_5(%arg0: i32) -> (i32, i32) {
    %c0_i32 = arith.constant 0 : i32
    %c0_i32_0 = arith.constant 0 : i32
    %c0_i32_1 = arith.constant 0 : i32
    return %c0_i32, %c0_i32_0 : i32, i32
  }
  func.func @transform_6(%arg0: i32) -> (i32, i32) {
    %c0_i32 = arith.constant 0 : i32
    %c0_i32_0 = arith.constant 0 : i32
    %c0_i32_1 = arith.constant 0 : i32
    return %c0_i32, %c0_i32_0 : i32, i32
  }
  func.func @transform_7(%arg0: i32) -> (i32, i32, i32) {
    %c0_i32 = arith.constant 0 : i32
    %c0_i32_0 = arith.constant 0 : i32
    %c0_i32_1 = arith.constant 0 : i32
    return %arg0, %c0_i32, %c0_i32_0 : i32, i32, i32
  }
}

</mosaic_0001>

<llo_original>
// kernel: tile.18
$region0: #{tile.18}
  #allocation0 [shape = 's32[1]{0}', space=sflag, size = 0x4, scoped, tag = 'scoped memory for tile.18']
  %s0 = inlined_call_operand.vmem [shape: f32[8], index: 0, kind: input, shape index: {}]
  %s1 = inlined_call_operand.vmem [shape: f32[16,8], index: 1, kind: output, shape index: {}]
  // Predicated region
  $region2: #{tile.18} parent=0 // pred_check
    _
  $region3: #{tile.18} parent=0 // pred_check_branch
    %3 = sbr.rel (0) target = $region5
  $region4: #{tile.18} parent=0 // pred_region
    _
  $region5: #{tile.18} parent=0 // pred_fallthru
    _
  %v4 = vld [vmem:[%s0] ss:$0 sm:$0xff]
  %5 = vst [vmem:[%s1] sm:$0xff] %v4
  %s6 = scalar_lea.vmem %s1, 8
  %7 = vst [vmem:[%s6] sm:$0xff] %v4

// kernel: tile.19
$region0: #{tile.19}
  %s0 = inlined_call_operand.vmem [shape: f32[16,8], index: 0, kind: input, shape index: {}]
  %s1 = inlined_call_operand.vmem [shape: f32[1,128], index: 1, kind: output, shape index: {}]
  $region1: #{tile.19} parent=0
    #allocation0 [shape = 'u8[4096]{0}', space=vmem, size = 0x1000, scoped, tag = 'scoped mem for output reshape']
    %v2 = vld [vmem:[%s0] sm:$0x1]
    %vm3 = vcmask 64512
    %4 = vst.msk [vmem:[#allocation0] sm:$0x1] %vm3, %v2
    %s5 = scalar_lea.vmem %s0, 15
    %v6 = vld [vmem:[%s5] sm:$0x1]
    %7 = vrot.lane.b32.xlu0 %v6, 120
    %v8 = vpop.permute.xlu0 %7
    %vm9 = vcmask 1048512
    %10 = vst.msk [vmem:[#allocation0] sm:$0x1] %vm9, %v8
    %s11 = scalar_lea.vmem %s0, 14
    %v12 = vld [vmem:[%s11] sm:$0x1]
    %13 = vrot.lane.b32.xlu0 %v12, 112
    %v14 = vpop.permute.xlu0 %13
    %vm15 = vcmask 982912
    %16 = vst.msk [vmem:[#allocation0] sm:$0x1] %vm15, %v14
    %s17 = scalar_lea.vmem %s0, 13
    %v18 = vld [vmem:[%s17] sm:$0x1]
    %19 = vrot.lane.b32.xlu0 %v18, 104
    %v20 = vpop.permute.xlu0 %19
    %vm21 = vcmask 917312
    %22 = vst.msk [vmem:[#allocation0] sm:$0x1] %vm21, %v20
    %s23 = scalar_lea.vmem %s0, 12
    %v24 = vld [vmem:[%s23] sm:$0x1]
    %25 = vrot.lane.b32.xlu0 %v24, 96
    %v26 = vpop.permute.xlu0 %25
    %vm27 = vcmask 851712
    %28 = vst.msk [vmem:[#allocation0] sm:$0x1] %vm27, %v26
    %s29 = scalar_lea.vmem %s0, 11
    %v30 = vld [vmem:[%s29] sm:$0x1]
    %31 = vrot.lane.b32.xlu0 %v30, 88
    %v32 = vpop.permute.xlu0 %31
    %vm33 = vcmask 786112
    %34 = vst.msk [vmem:[#allocation0] sm:$0x1] %vm33, %v32
    %s35 = scalar_lea.vmem %s0, 10
    %v36 = vld [vmem:[%s35] sm:$0x1]
    %37 = vrot.lane.b32.xlu0 %v36, 80
    %v38 = vpop.permute.xlu0 %37
    %vm39 = vcmask 720512
    %40 = vst.msk [vmem:[#allocation0] sm:$0x1] %vm39, %v38
    %s41 = scalar_lea.vmem %s0, 9
    %v42 = vld [vmem:[%s41] sm:$0x1]
    %43 = vrot.lane.b32.xlu0 %v42, 72
    %v44 = vpop.permute.xlu0 %43
    %vm45 = vcmask 654912
    %46 = vst.msk [vmem:[#allocation0] sm:$0x1] %vm45, %v44
    %s47 = scalar_lea.vmem %s0, 8
    %v48 = vld [vmem:[%s47] sm:$0x1]
    %49 = vrot.lane.b32.xlu0 %v48, 64
    %v50 = vpop.permute.xlu0 %49
    %vm51 = vcmask 589312
    %52 = vst.msk [vmem:[#allocation0] sm:$0x1] %vm51, %v50
    %s53 = scalar_lea.vmem %s0, 7
    %v54 = vld [vmem:[%s53] sm:$0x1]
    %55 = vrot.lane.b32.xlu0 %v54, 56
    %v56 = vpop.permute.xlu0 %55
    %vm57 = vcmask 523712
    %58 = vst.msk [vmem:[#allocation0] sm:$0x1] %vm57, %v56
    %s59 = scalar_lea.vmem %s0, 6
    %v60 = vld [vmem:[%s59] sm:$0x1]
    %61 = vrot.lane.b32.xlu0 %v60, 48
    %v62 = vpop.permute.xlu0 %61
    %vm63 = vcmask 458112
    %64 = vst.msk [vmem:[#allocation0] sm:$0x1] %vm63, %v62
    %s65 = scalar_lea.vmem %s0, 5
    %v66 = vld [vmem:[%s65] sm:$0x1]
    %67 = vrot.lane.b32.xlu0 %v66, 40
    %v68 = vpop.permute.xlu0 %67
    %vm69 = vcmask 392512
    %70 = vst.msk [vmem:[#allocation0] sm:$0x1] %vm69, %v68
    %s71 = scalar_lea.vmem %s0, 4
    %v72 = vld [vmem:[%s71] sm:$0x1]
    %73 = vrot.lane.b32.xlu0 %v72, 32
    %v74 = vpop.permute.xlu0 %73
    %vm75 = vcmask 326912
    %76 = vst.msk [vmem:[#allocation0] sm:$0x1] %vm75, %v74
    %s77 = scalar_lea.vmem %s0, 3
    %v78 = vld [vmem:[%s77] sm:$0x1]
    %79 = vrot.lane.b32.xlu0 %v78, 24
    %v80 = vpop.permute.xlu0 %79
    %vm81 = vcmask 261312
    %82 = vst.msk [vmem:[#allocation0] sm:$0x1] %vm81, %v80
    %s83 = scalar_lea.vmem %s0, 2
    %v84 = vld [vmem:[%s83] sm:$0x1]
    %85 = vrot.lane.b32.xlu0 %v84, 16
    %v86 = vpop.permute.xlu0 %85
    %vm87 = vcmask 195712
    %88 = vst.msk [vmem:[#allocation0] sm:$0x1] %vm87, %v86
    %s89 = scalar_lea.vmem %s0, 1
    %v90 = vld [vmem:[%s89] sm:$0x1]
    %91 = vrot.lane.b32.xlu0 %v90, 8
    %v92 = vpop.permute.xlu0 %91
    %vm93 = vcmask 130112
    %94 = vst.msk [vmem:[#allocation0] sm:$0x1] %vm93, %v92
    %s96 = sshllo.u32 0, 1
    %v98 = vld [vmem:[#allocation0] sm:%s96]
    %s99 = sshllo.u32 0, 1
    %100 = vst [vmem:[%s1] sm:%s99] %v98

// kernel: gelu_conv_block.1
$region0: #{gelu_conv_block.1}
  #allocation0 [shape = 'u32[]', space=smem, size = 0x4, offset = 0x4, fixed_abs, tag = 'smem constant byte address 0x4 - core index']
  #allocation1 [shape = 'u32[144,128]{1,0:T(1,128)}', space=vmem, size = 0x12000, scoped, tag = 'internal scratch']
  %s0 = inlined_call_operand.vmem [shape: f32[2,16,216], index: 0, kind: input, shape index: {}]
  %s1 = inlined_call_operand.vmem [shape: f32[216,128], index: 1, kind: input, shape index: {}]
  %s2 = inlined_call_operand.vmem [shape: f32[1,128], index: 2, kind: input, shape index: {}]
  %s3 = inlined_call_operand.vmem [shape: f32[1,128], index: 3, kind: input, shape index: {}]
  %s4 = inlined_call_operand.vmem [shape: f32[1,128], index: 4, kind: input, shape index: {}]
  %s5 = inlined_call_operand.vmem [shape: f32[128,2], index: 5, kind: input, shape index: {}]
  %s6 = inlined_call_operand.vmem [shape: f32[2,128], index: 6, kind: input, shape index: {}]
  %s7 = inlined_call_operand.vmem [shape: f32[2,16,128], index: 7, kind: output, shape index: {}]
  %s8 = sld [smem:[#allocation0]]
  $region61: #{gelu_conv_block.1} parent=0
    _
  %s10 = ssub.s32 1, %s8
  %s11 = scalar_select 0, %s10, %s8
  loop: start=0, step=1, limit=4
  $region2: #{gelu_conv_block.1} parent=0 // loop_pre_header
    _
  $region3: #{gelu_conv_block.1} parent=0 // loop_header
    %s13 = sphi 0, %s17
    %p14 = scmp.ge.s32.totalorder %s13, 4
    %s23 = sphi 0, %s25
    %s26 = sphi 0, %s23
    %s27 = sphi 0, %s26
    %s43 = sphi 0, %s27
    %s47 = sphi 0, %s47
    %s49 = sphi 0, %s47
    %s50 = sphi 0, %s49
    %s64 = sphi 0, %s50
    %s68 = sphi 0, %s68
    %s70 = sphi 0, %s68
    %s71 = sphi 0, %s70
    %s85 = sphi 0, %s71
    %s89 = sphi 0, %s89
    %s91 = sphi 0, %s89
    %s92 = sphi 0, %s91
    %s106 = sphi 0, %s92
    %s110 = sphi 0, %s110
    %s112 = sphi 0, %s110
    %s113 = sphi 0, %s112
    %s127 = sphi 0, %s113
    %s131 = sphi 0, %s131
    %s133 = sphi 0, %s131
    %s134 = sphi 0, %s133
    %s148 = sphi 0, %s134
    %s152 = sphi 0, %s152
    %s154 = sphi 0, %s152
    %s155 = sphi 0, %s154
    %s169 = sphi 0, %s155
    %s175 = sphi 0, %s177
    %s178 = sphi 0, %s175
    %s179 = sphi 0, %s178
    %s195 = sphi 0, %s179
  $region4: #{gelu_conv_block.1} parent=0 // loop_header_branch
    %16 = sbr.rel (%p14) target = $region8
  $region5: #{gelu_conv_block.1} parent=0 // loop_body
    %s18 = ssub.s32 %s13, 1
    %s19 = ssub.s32 %s13, 2
    %s20 = sadd.s32 %s13, 1
    %s21 = ssub.s32 %s13, %s20
    %p22 = scmp.eq.s32.totalorder %s21, 0
    %s24 = sadd.s32 %s23, 1
    %s25 = scalar_select %p22, %s23, %s24
    %p28 = pneg %p22
    %p29 = scmp.eq.s32.totalorder %s13, 1
    %p30 = por %p28, %p29
    %p31 = scmp.ne.s32.totalorder %s23, %s26
    %p32 = scmp.eq.s32.totalorder %s13, 0
    %p33 = por %p31, %p32
    %p34 = scmp.ne.s32.totalorder %s23, %s26
    %p35 = scmp.eq.s32.totalorder %s18, 1
    %p36 = por %p34, %p35
    %p37 = scmp.ne.s32.totalorder %s26, %s27
    %p38 = scmp.eq.s32.totalorder %s18, 0
    %p39 = por %p37, %p38
    %p40 = scmp.ne.s32.totalorder %s26, %s27
    %p41 = scmp.eq.s32.totalorder %s19, 1
    %p42 = por %p40, %p41
    %p44 = scmp.ne.s32.totalorder %s27, %s43
    %p45 = scmp.eq.s32.totalorder %s19, 0
    %p46 = por %p44, %p45
    %s48 = sadd.s32 %s47, 1
    %p51 = scmp.eq.s32.totalorder %s13, 1
    %p52 = scmp.ne.s32.totalorder %s47, %s49
    %p53 = scmp.eq.s32.totalorder %s13, 0
    %p54 = por %p52, %p53
    %p55 = scmp.ne.s32.totalorder %s47, %s49
    %p56 = scmp.eq.s32.totalorder %s18, 1
    %p57 = por %p55, %p56
    %p58 = scmp.ne.s32.totalorder %s49, %s50
    %p59 = scmp.eq.s32.totalorder %s18, 0
    %p60 = por %p58, %p59
    %p61 = scmp.ne.s32.totalorder %s49, %s50
    %p62 = scmp.eq.s32.totalorder %s19, 1
    %p63 = por %p61, %p62
    %p65 = scmp.ne.s32.totalorder %s50, %s64
    %p66 = scmp.eq.s32.totalorder %s19, 0
    %p67 = por %p65, %p66
    %s69 = sadd.s32 %s68, 1
    %p72 = scmp.eq.s32.totalorder %s13, 1
    %p73 = scmp.ne.s32.totalorder %s68, %s70
    %p74 = scmp.eq.s32.totalorder %s13, 0
    %p75 = por %p73, %p74
    %p76 = scmp.ne.s32.totalorder %s68, %s70
    %p77 = scmp.eq.s32.totalorder %s18, 1
    %p78 = por %p76, %p77
    %p79 = scmp.ne.s32.totalorder %s70, %s71
    %p80 = scmp.eq.s32.totalorder %s18, 0
    %p81 = por %p79, %p80
    %p82 = scmp.ne.s32.totalorder %s70, %s71
    %p83 = scmp.eq.s32.totalorder %s19, 1
    %p84 = por %p82, %p83
    %p86 = scmp.ne.s32.totalorder %s71, %s85
    %p87 = scmp.eq.s32.totalorder %s19, 0
    %p88 = por %p86, %p87
    %s90 = sadd.s32 %s89, 1
    %p93 = scmp.eq.s32.totalorder %s13, 1
    %p94 = scmp.ne.s32.totalorder %s89, %s91
    %p95 = scmp.eq.s32.totalorder %s13, 0
    %p96 = por %p94, %p95
    %p97 = scmp.ne.s32.totalorder %s89, %s91
    %p98 = scmp.eq.s32.totalorder %s18, 1
    %p99 = por %p97, %p98
    %p100 = scmp.ne.s32.totalorder %s91, %s92
    %p101 = scmp.eq.s32.totalorder %s18, 0
    %p102 = por %p100, %p101
    %p103 = scmp.ne.s32.totalorder %s91, %s92
    %p104 = scmp.eq.s32.totalorder %s19, 1
    %p105 = por %p103, %p104
    %p107 = scmp.ne.s32.totalorder %s92, %s106
    %p108 = scmp.eq.s32.totalorder %s19, 0
    %p109 = por %p107, %p108
    %s111 = sadd.s32 %s110, 1
    %p114 = scmp.eq.s32.totalorder %s13, 1
    %p115 = scmp.ne.s32.totalorder %s110, %s112
    %p116 = scmp.eq.s32.totalorder %s13, 0
    %p117 = por %p115, %p116
    %p118 = scmp.ne.s32.totalorder %s110, %s112
    %p119 = scmp.eq.s32.totalorder %s18, 1
    %p120 = por %p118, %p119
    %p121 = scmp.ne.s32.totalorder %s112, %s113
    %p122 = scmp.eq.s32.totalorder %s18, 0
    %p123 = por %p121, %p122
    %p124 = scmp.ne.s32.totalorder %s112, %s113
    %p125 = scmp.eq.s32.totalorder %s19, 1
    %p126 = por %p124, %p125
    %p128 = scmp.ne.s32.totalorder %s113, %s127
    %p129 = scmp.eq.s32.totalorder %s19, 0
    %p130 = por %p128, %p129
    %s132 = sadd.s32 %s131, 1
    %p135 = scmp.eq.s32.totalorder %s13, 1
    %p136 = scmp.ne.s32.totalorder %s131, %s133
    %p137 = scmp.eq.s32.totalorder %s13, 0
    %p138 = por %p136, %p137
    %p139 = scmp.ne.s32.totalorder %s131, %s133
    %p140 = scmp.eq.s32.totalorder %s18, 1
    %p141 = por %p139, %p140
    %p142 = scmp.ne.s32.totalorder %s133, %s134
    %p143 = scmp.eq.s32.totalorder %s18, 0
    %p144 = por %p142, %p143
    %p145 = scmp.ne.s32.totalorder %s133, %s134
    %p146 = scmp.eq.s32.totalorder %s19, 1
    %p147 = por %p145, %p146
    %p149 = scmp.ne.s32.totalorder %s134, %s148
    %p150 = scmp.eq.s32.totalorder %s19, 0
    %p151 = por %p149, %p150
    %s153 = sadd.s32 %s152, 1
    %p156 = scmp.eq.s32.totalorder %s13, 1
    %p157 = scmp.ne.s32.totalorder %s152, %s154
    %p158 = scmp.eq.s32.totalorder %s13, 0
    %p159 = por %p157, %p158
    %p160 = scmp.ne.s32.totalorder %s152, %s154
    %p161 = scmp.eq.s32.totalorder %s18, 1
    %p162 = por %p160, %p161
    %p163 = scmp.ne.s32.totalorder %s154, %s155
    %p164 = scmp.eq.s32.totalorder %s18, 0
    %p165 = por %p163, %p164
    %p166 = scmp.ne.s32.totalorder %s154, %s155
    %p167 = scmp.eq.s32.totalorder %s19, 1
    %p168 = por %p166, %p167
    %p170 = scmp.ne.s32.totalorder %s155, %s169
    %p171 = scmp.eq.s32.totalorder %s19, 0
    %p172 = por %p170, %p171
    %s173 = ssub.s32 %s13, %s20
    %p174 = scmp.eq.s32.totalorder %s173, 0
    %s176 = sadd.s32 %s175, 1
    %s177 = scalar_select %p174, %s175, %s176
    %p180 = pneg %p174
    %p181 = scmp.eq.s32.totalorder %s13, 1
    %p182 = por %p180, %p181
    %p183 = scmp.ne.s32.totalorder %s175, %s178
    %p184 = scmp.eq.s32.totalorder %s13, 0
    %p185 = por %p183, %p184
    %p186 = scmp.ne.s32.totalorder %s175, %s178
    %p187 = scmp.eq.s32.totalorder %s18, 1
    %p188 = por %p186, %p187
    %p189 = scmp.ne.s32.totalorder %s178, %s179
    %p190 = scmp.eq.s32.totalorder %s18, 0
    %p191 = por %p189, %p190
    %p192 = scmp.ne.s32.totalorder %s178, %s179
    %p193 = scmp.eq.s32.totalorder %s19, 1
    %p194 = por %p192, %p193
    %p196 = scmp.ne.s32.totalorder %s179, %s195
    %p197 = scmp.eq.s32.totalorder %s19, 0
    %p198 = por %p196, %p197
    %p199 = scmp.le.s32.totalorder 1, %s13
    %p200 = scmp.lt.s32.totalorder %s13, 3
    %p201 = pnand %p199, %p200
    %p202 = pneg %p201
    // Predicated region
    $region9: #{gelu_conv_block.1} parent=5 // pred_check
      _
    $region10: #{gelu_conv_block.1} parent=5 // pred_check_branch
      %204 = sbr.rel (%p201) target = $region12
    $region11: #{gelu_conv_block.1} parent=5 // pred_region
      %s205 = ssub.s32 %s13, 1
      // Predicated region
      $region13: #{gelu_conv_block.1} parent=11 // pred_check
        %p206 = pneg %p60
      $region14: #{gelu_conv_block.1} parent=11 // pred_check_branch
        %208 = sbr.rel (%p206) target = $region16
      $region15: #{gelu_conv_block.1} parent=11 // pred_region
        _
      $region16: #{gelu_conv_block.1} parent=11 // pred_fallthru
        _
      // Predicated region
      $region17: #{gelu_conv_block.1} parent=11 // pred_check
        %p209 = pneg %p81
      $region18: #{gelu_conv_block.1} parent=11 // pred_check_branch
        %211 = sbr.rel (%p209) target = $region20
      $region19: #{gelu_conv_block.1} parent=11 // pred_region
        _
      $region20: #{gelu_conv_block.1} parent=11 // pred_fallthru
        _
      // Predicated region
      $region21: #{gelu_conv_block.1} parent=11 // pred_check
        %p212 = pneg %p102
      $region22: #{gelu_conv_block.1} parent=11 // pred_check_branch
        %214 = sbr.rel (%p212) target = $region24
      $region23: #{gelu_conv_block.1} parent=11 // pred_region
        _
      $region24: #{gelu_conv_block.1} parent=11 // pred_fallthru
        _
      // Predicated region
      $region25: #{gelu_conv_block.1} parent=11 // pred_check
        %p215 = pneg %p123
      $region26: #{gelu_conv_block.1} parent=11 // pred_check_branch
        %217 = sbr.rel (%p215) target = $region28
      $region27: #{gelu_conv_block.1} parent=11 // pred_region
        _
      $region28: #{gelu_conv_block.1} parent=11 // pred_fallthru
        _
      // Predicated region
      $region29: #{gelu_conv_block.1} parent=11 // pred_check
        %p218 = pneg %p144
      $region30: #{gelu_conv_block.1} parent=11 // pred_check_branch
        %220 = sbr.rel (%p218) target = $region32
      $region31: #{gelu_conv_block.1} parent=11 // pred_region
        _
      $region32: #{gelu_conv_block.1} parent=11 // pred_fallthru
        _
      // Predicated region
      $region33: #{gelu_conv_block.1} parent=11 // pred_check
        %p221 = pneg %p165
      $region34: #{gelu_conv_block.1} parent=11 // pred_check_branch
        %223 = sbr.rel (%p221) target = $region36
      $region35: #{gelu_conv_block.1} parent=11 // pred_region
        _
      $region36: #{gelu_conv_block.1} parent=11 // pred_fallthru
        _
    $region12: #{gelu_conv_block.1} parent=5 // pred_fallthru
      _
    %p224 = scmp.lt.s32.totalorder %s13, 2
    // Predicated region
    $region37: #{gelu_conv_block.1} parent=5 // pred_check
      %p225 = pneg %p224
    $region38: #{gelu_conv_block.1} parent=5 // pred_check_branch
      %227 = sbr.rel (%p225) target = $region40
    $region39: #{gelu_conv_block.1} parent=5 // pred_region
      // Predicated region
      $region41: #{gelu_conv_block.1} parent=39 // pred_check
        %p228 = pneg %p33
      $region42: #{gelu_conv_block.1} parent=39 // pred_check_branch
        %230 = sbr.rel (%p228) target = $region44
      $region43: #{gelu_conv_block.1} parent=39 // pred_region
        %p231 = scmp.lt.s32.totalorder %s13, 1
        %s232 = scalar_select %p231, %s13, 1
        %s233 = smul.addr %s232, 4
        %s234 = smul.addr %s233, 8
        %s235 = scalar_lea.vmem %s0, %s234
      $region44: #{gelu_conv_block.1} parent=39 // pred_fallthru
        _
    $region40: #{gelu_conv_block.1} parent=5 // pred_fallthru
      _
    %p236 = scmp.le.s32.totalorder 1, %s13
    %p237 = scmp.lt.s32.totalorder %s13, 3
    %p238 = pnand %p236, %p237
    %p239 = pneg %p238
    // Predicated region
    $region45: #{gelu_conv_block.1} parent=5 // pred_check
      _
    $region46: #{gelu_conv_block.1} parent=5 // pred_check_branch
      %241 = sbr.rel (%p238) target = $region48
    $region47: #{gelu_conv_block.1} parent=5 // pred_region
      %s242 = ssub.s32 %s13, 1
      %p243 = scmp.lt.s32.totalorder %s18, 1
      %s244 = scalar_select %p243, %s18, 1
      %s245 = smul.addr %s244, 4
      %s246 = smul.addr %s245, 8
      %s247 = scalar_lea.vmem %s0, %s246
      %p248 = pneg %p39
      %p249 = pneg %p36
      %p250 = pneg %p60
      %p251 = pneg %p57
      %p252 = pneg %p81
      %p253 = pneg %p78
      %p254 = pneg %p102
      %p255 = pneg %p99
      %p256 = pneg %p123
      %p257 = pneg %p120
      %p258 = pneg %p144
      %p259 = pneg %p141
      %p260 = pneg %p165
      %p261 = pneg %p162
      %p262 = pneg %p191
      %p263 = pneg %p188
      %p264 = scmp.lt.s32.totalorder %s18, 1
      %s265 = scalar_select %p264, %s18, 1
      %s266 = smul.addr %s265, 2
      %s267 = smul.addr %s266, 8
      %s268 = scalar_lea.vmem %s7, %s267
      %p269 = scmp.lt.s32.totalorder %s18, 1
      %s270 = scalar_select %p269, %s18, 1
      %s271 = smul.addr %s270, 4
      %s272 = smul.addr %s271, 8
      %s273 = scalar_lea.vmem %s0, %s272
      %p274 = scmp.lt.s32.totalorder %s18, 1
      %s275 = scalar_select %p274, %s18, 1
      %s276 = smul.addr %s275, 2
      %s277 = smul.addr %s276, 8
      %s278 = scalar_lea.vmem %s7, %s277
      %v279 = vld [vmem:[%s273] sm:$0xff]
      %v280 = vld [vmem:[%s273 + $0x8] sm:$0xff]
      %v281 = vld [vmem:[%s273 + $0x10] sm:$0xff]
      %v282 = vld [vmem:[%s273 + $0x18] sm:$0xff]
      %v283 = vld [vmem:[%s1] sm:$0xff]
      %v284 = vld [vmem:[%s1 + $0x8] sm:$0xff]
      %v285 = vld [vmem:[%s1 + $0x10] sm:$0xff]
      %v286 = vld [vmem:[%s1 + $0x18] sm:$0xff]
      %v287 = vld [vmem:[%s1 + $0x20] sm:$0xff]
      %v288 = vld [vmem:[%s1 + $0x28] sm:$0xff]
      %v289 = vld [vmem:[%s1 + $0x30] sm:$0xff]
      %v290 = vld [vmem:[%s1 + $0x38] sm:$0xff]
      %v291 = vld [vmem:[%s1 + $0x40] sm:$0xff]
      %v292 = vld [vmem:[%s1 + $0x48] sm:$0xff]
      %v293 = vld [vmem:[%s1 + $0x50] sm:$0xff]
      %v294 = vld [vmem:[%s1 + $0x58] sm:$0xff]
      %v295 = vld [vmem:[%s1 + $0x60] sm:$0xff]
      %v296 = vld [vmem:[%s1 + $0x68] sm:$0xff]
      %v297 = vld [vmem:[%s1 + $0x70] sm:$0xff]
      %v298 = vld [vmem:[%s1 + $0x78] sm:$0xff]
      %v299 = vld [vmem:[%s1 + $0x80] sm:$0xff]
      %v300 = vld [vmem:[%s1 + $0x88] sm:$0xff]
      %v301 = vld [vmem:[%s1 + $0x90] sm:$0xff]
      %v302 = vld [vmem:[%s1 + $0x98] sm:$0xff]
      %v303 = vld [vmem:[%s1 + $0xa0] sm:$0xff]
      %v304 = vld [vmem:[%s1 + $0xa8] sm:$0xff]
      %v305 = vld [vmem:[%s1 + $0xb0] sm:$0xff]
      %v306 = vld [vmem:[%s1 + $0xb8] sm:$0xff]
      %v307 = vld [vmem:[%s1 + $0xc0] sm:$0xff]
      %v308 = vld [vmem:[%s1 + $0xc8] sm:$0xff]
      %v309 = vld [vmem:[%s1 + $0xd0] sm:$0xff]
      %v310 = vld [vmem:[%s2] sm:$0x1]
      %v312 = vlaneseq
      %v313 = vshrl.u32 %v312, 7
      %v314 = vsub.s32 0, %v313
      %v315 = vrot.slane %v310, %v314
      %vm317 = vcmask 719872
      %v319 = vsel %vm317, %v280, 0
      %v322 = vsel %vm317, %v282, 0
      %324 = vmatprep.subr.mxu0 0.0
      %325 = vmatpush1.msra.mxu0 %v283
      %326 = vmatprep.subr.mxu0 0.0
      %327 = vmatpush1.msra.mxu0 %v284
      %328 = vmatprep.subr.mxu0 0.0
      %329 = vmatpush1.msra.mxu0 %v285
      %330 = vmatprep.subr.mxu0 0.0
      %331 = vmatpush1.msra.mxu0 %v286
      %332 = vmatprep.subr.mxu0 0.0
      %333 = vmatpush1.msra.mxu0 %v287
      %334 = vmatprep.subr.mxu0 0.0
      %335 = vmatpush1.msra.mxu0 %v288
      %336 = vmatprep.subr.mxu0 0.0
      %337 = vmatpush1.msra.mxu0 %v289
      %338 = vmatprep.subr.mxu0 0.0
      %339 = vmatpush1.msra.mxu0 %v290
      %340 = vmatprep.subr.mxu0 0.0
      %341 = vmatpush1.msra.mxu0 %v291
      %342 = vmatprep.subr.mxu0 0.0
      %343 = vmatpush1.msra.mxu0 %v292
      %344 = vmatprep.subr.mxu0 0.0
      %345 = vmatpush1.msra.mxu0 %v293
      %346 = vmatprep.subr.mxu0 0.0
      %347 = vmatpush1.msra.mxu0 %v294
      %348 = vmatprep.subr.mxu0 0.0
      %349 = vmatpush1.msra.mxu0 %v295
      %350 = vmatprep.subr.mxu0 0.0
      %351 = vmatpush1.msra.mxu0 %v296
      %352 = vmatprep.subr.mxu0 0.0
      %353 = vmatpush1.msra.mxu0 %v297
      %354 = vmatprep.subr.mxu0 0.0
      %355 = vmatpush1.msra.mxu0 %v298
      %356 = vmatprep.subr.mxu0 0.0
      %357 = vmatpush1.msra.mxu0 %v299
      %358 = vmatprep.subr.mxu0 0.0
      %359 = vmatpush1.msra.mxu0 %v300
      %360 = vmatprep.subr.mxu0 0.0
      %361 = vmatpush1.msra.mxu0 %v301
      %362 = vmatprep.subr.mxu0 0.0
      %363 = vmatpush1.msra.mxu0 %v302
      %364 = vmatprep.subr.mxu0 0.0
      %365 = vmatpush1.msra.mxu0 %v303
      %366 = vmatprep.subr.mxu0 0.0
      %367 = vmatpush1.msra.mxu0 %v304
      %368 = vmatprep.subr.mxu0 0.0
      %369 = vmatpush1.msra.mxu0 %v305
      %370 = vmatprep.subr.mxu0 0.0
      %371 = vmatpush1.msra.mxu0 %v306
      %372 = vmatprep.subr.mxu0 0.0
      %373 = vmatpush1.msra.mxu0 %v307
      %374 = vmatprep.subr.mxu0 0.0
      %375 = vmatpush1.msra.mxu0 %v308
      %376 = vmatprep.subr.mxu0 0.0
      %377 = vmatpush1.msra.mxu0 %v309
      %378 = vmatprep.subr.mxu0 0.0
      %379 = vmatpush1.msra.mxu0 0.0
      %380 = vmatprep.subr.mxu0 0.0
      %381 = vmatpush1.msra.mxu0 0.0
      %382 = vmatprep.subr.mxu0 0.0
      %383 = vmatpush1.msra.mxu0 0.0
      %384 = vmatprep.subr.mxu0 0.0
      %385 = vmatpush1.msra.mxu0 0.0
      %386 = vmatprep.subr.mxu0 0.0
      %387 = vmatpush1.msra.mxu0 0.0
      %388 = vmatprep.mubr.f32.mxu0 %v319
      %389 = vmatmul.mubr.f32.gmra.mrb[0].mxu0 %v279
      %v390 = vpop.f32.mrb[0].mxu0
      %v391 = vadd.f32 %v315, %v390
      %v392 = vpop.f32.mrb[0].mxu0
      %393 = vmatprep.mubr.f32.mxu0 %v322
      %394 = vmatmul.mubr.f32.gmra.mrb[0].mxu0 %v281
      %v395 = vpop.f32.mrb[0].mxu0
      %v396 = vadd.f32 %v315, %v395
      %v397 = vpop.f32.mrb[0].mxu0
      %398 = vdwg.mxu0
      %v399 = vld [vmem:[%s5] sm:$0xff]
      %v400 = vld [vmem:[%s5 + $0x8] sm:$0xff]
      %v401 = vld [vmem:[%s5 + $0x10] sm:$0xff]
      %v402 = vld [vmem:[%s5 + $0x18] sm:$0xff]
      %v403 = vld [vmem:[%s5 + $0x20] sm:$0xff]
      %v404 = vld [vmem:[%s5 + $0x28] sm:$0xff]
      %v405 = vld [vmem:[%s5 + $0x30] sm:$0xff]
      %v406 = vld [vmem:[%s5 + $0x38] sm:$0xff]
      %v407 = vld [vmem:[%s5 + $0x40] sm:$0xff]
      %v408 = vld [vmem:[%s5 + $0x48] sm:$0xff]
      %v409 = vld [vmem:[%s5 + $0x50] sm:$0xff]
      %v410 = vld [vmem:[%s5 + $0x58] sm:$0xff]
      %v411 = vld [vmem:[%s5 + $0x60] sm:$0xff]
      %v412 = vld [vmem:[%s5 + $0x68] sm:$0xff]
      %v413 = vld [vmem:[%s5 + $0x70] sm:$0xff]
      %v414 = vld [vmem:[%s5 + $0x78] sm:$0xff]
      %v415 = vld [vmem:[%s6] sm:$0x3]
      %v416 = vadd.f32 %v391, %v396
      %v417 = vrot.slane %v416, 4
      %v418 = vadd.f32 %v416, %v417
      %v419 = vrot.slane %v418, 2
      %v420 = vadd.f32 %v418, %v419
      %v421 = vrot.slane %v420, 1
      %v422 = vadd.f32 %v420, %v421
      %423 = vmatprep.subr.mxu0 0.0
      %424 = vmatpush1.msra.mxu0 %v399
      %425 = vmatprep.subr.mxu0 0.0
      %426 = vmatpush1.msra.mxu0 %v400
      %427 = vmatprep.subr.mxu0 0.0
      %428 = vmatpush1.msra.mxu0 %v401
      %429 = vmatprep.subr.mxu0 0.0
      %430 = vmatpush1.msra.mxu0 %v402
      %431 = vmatprep.subr.mxu0 0.0
      %432 = vmatpush1.msra.mxu0 %v403
      %433 = vmatprep.subr.mxu0 0.0
      %434 = vmatpush1.msra.mxu0 %v404
      %435 = vmatprep.subr.mxu0 0.0
      %436 = vmatpush1.msra.mxu0 %v405
      %437 = vmatprep.subr.mxu0 0.0
      %438 = vmatpush1.msra.mxu0 %v406
      %439 = vmatprep.subr.mxu0 0.0
      %440 = vmatpush1.msra.mxu0 %v407
      %441 = vmatprep.subr.mxu0 0.0
      %442 = vmatpush1.msra.mxu0 %v408
      %443 = vmatprep.subr.mxu0 0.0
      %444 = vmatpush1.msra.mxu0 %v409
      %445 = vmatprep.subr.mxu0 0.0
      %446 = vmatpush1.msra.mxu0 %v410
      %447 = vmatprep.subr.mxu0 0.0
      %448 = vmatpush1.msra.mxu0 %v411
      %449 = vmatprep.subr.mxu0 0.0
      %450 = vmatpush1.msra.mxu0 %v412
      %451 = vmatprep.subr.mxu0 0.0
      %452 = vmatpush1.msra.mxu0 %v413
      %453 = vmatprep.subr.mxu0 0.0
      %454 = vmatpush1.msra.mxu0 %v414
      %455 = vmatprep.subr.mxu0 0.0
      %456 = vmatpush1.msra.mxu0 0.0
      %457 = vmatprep.subr.mxu0 0.0
      %458 = vmatpush1.msra.mxu0 0.0
      %459 = vmatprep.subr.mxu0 0.0
      %460 = vmatpush1.msra.mxu0 0.0
      %461 = vmatprep.subr.mxu0 0.0
      %462 = vmatpush1.msra.mxu0 0.0
      %463 = vmatprep.subr.mxu0 0.0
      %464 = vmatpush1.msra.mxu0 0.0
      %465 = vmatprep.subr.mxu0 0.0
      %466 = vmatpush1.msra.mxu0 0.0
      %467 = vmatprep.subr.mxu0 0.0
      %468 = vmatpush1.msra.mxu0 0.0
      %469 = vmatprep.subr.mxu0 0.0
      %470 = vmatpush1.msra.mxu0 0.0
      %471 = vmatprep.subr.mxu0 0.0
      %472 = vmatpush1.msra.mxu0 0.0
      %473 = vmatprep.subr.mxu0 0.0
      %474 = vmatpush1.msra.mxu0 0.0
      %475 = vmatprep.subr.mxu0 0.0
      %476 = vmatpush1.msra.mxu0 0.0
      %477 = vmatprep.subr.mxu0 0.0
      %478 = vmatpush1.msra.mxu0 0.0
      %479 = vmatprep.subr.mxu0 0.0
      %480 = vmatpush1.msra.mxu0 0.0
      %481 = vmatprep.subr.mxu0 0.0
      %482 = vmatpush1.msra.mxu0 0.0
      %483 = vmatprep.subr.mxu0 0.0
      %484 = vmatpush1.msra.mxu0 0.0
      %485 = vmatprep.subr.mxu0 0.0
      %486 = vmatpush1.msra.mxu0 0.0
      %487 = vmatprep.mubr.f32.mxu0 0.0
      %488 = vmatmul.mubr.f32.gmra.mrb[0].mxu0 %v422
      %v489 = vpop.f32.mrb[0].mxu0
      %v490 = vadd.f32 0.0, %v489
      %v491 = vpop.f32.mrb[0].mxu0
      %492 = vdwg.mxu0
      %v493 = vrcp.pop 1024.0
      %v494 = vmul.f32 %v490, %v493
      %vm495 = vcmask 15360
      %v497 = vsel %vm495, %v494, 0
      %vm499 = vcmask 1041408
      %v501 = vsel %vm499, %v415, 0
      %503 = vmatprep.subr.mxu0 0.0
      %504 = vmatpush1.msra.mxu0 %v501
      %505 = vmatprep.subr.mxu0 0.0
      %506 = vmatpush1.msra.mxu0 0.0
      %507 = vmatprep.subr.mxu0 0.0
      %508 = vmatpush1.msra.mxu0 0.0
      %509 = vmatprep.subr.mxu0 0.0
      %510 = vmatpush1.msra.mxu0 0.0
      %511 = vmatprep.subr.mxu0 0.0
      %512 = vmatpush1.msra.mxu0 0.0
      %513 = vmatprep.subr.mxu0 0.0
      %514 = vmatpush1.msra.mxu0 0.0
      %515 = vmatprep.subr.mxu0 0.0
      %516 = vmatpush1.msra.mxu0 0.0
      %517 = vmatprep.subr.mxu0 0.0
      %518 = vmatpush1.msra.mxu0 0.0
      %519 = vmatprep.subr.mxu0 0.0
      %520 = vmatpush1.msra.mxu0 0.0
      %521 = vmatprep.subr.mxu0 0.0
      %522 = vmatpush1.msra.mxu0 0.0
      %523 = vmatprep.subr.mxu0 0.0
      %524 = vmatpush1.msra.mxu0 0.0
      %525 = vmatprep.subr.mxu0 0.0
      %526 = vmatpush1.msra.mxu0 0.0
      %527 = vmatprep.subr.mxu0 0.0
      %528 = vmatpush1.msra.mxu0 0.0
      %529 = vmatprep.subr.mxu0 0.0
      %530 = vmatpush1.msra.mxu0 0.0
      %531 = vmatprep.subr.mxu0 0.0
      %532 = vmatpush1.msra.mxu0 0.0
      %533 = vmatprep.subr.mxu0 0.0
      %534 = vmatpush1.msra.mxu0 0.0
      %535 = vmatprep.subr.mxu0 0.0
      %536 = vmatpush1.msra.mxu0 0.0
      %537 = vmatprep.subr.mxu0 0.0
      %538 = vmatpush1.msra.mxu0 0.0
      %539 = vmatprep.subr.mxu0 0.0
      %540 = vmatpush1.msra.mxu0 0.0
      %541 = vmatprep.subr.mxu0 0.0
      %542 = vmatpush1.msra.mxu0 0.0
      %543 = vmatprep.subr.mxu0 0.0
      %544 = vmatpush1.msra.mxu0 0.0
      %545 = vmatprep.subr.mxu0 0.0
      %546 = vmatpush1.msra.mxu0 0.0
      %547 = vmatprep.subr.mxu0 0.0
      %548 = vmatpush1.msra.mxu0 0.0
      %549 = vmatprep.subr.mxu0 0.0
      %550 = vmatpush1.msra.mxu0 0.0
      %551 = vmatprep.subr.mxu0 0.0
      %552 = vmatpush1.msra.mxu0 0.0
      %553 = vmatprep.subr.mxu0 0.0
      %554 = vmatpush1.msra.mxu0 0.0
      %555 = vmatprep.subr.mxu0 0.0
      %556 = vmatpush1.msra.mxu0 0.0
      %557 = vmatprep.subr.mxu0 0.0
      %558 = vmatpush1.msra.mxu0 0.0
      %559 = vmatprep.subr.mxu0 0.0
      %560 = vmatpush1.msra.mxu0 0.0
      %561 = vmatprep.subr.mxu0 0.0
      %562 = vmatpush1.msra.mxu0 0.0
      %563 = vmatprep.subr.mxu0 0.0
      %564 = vmatpush1.msra.mxu0 0.0
      %565 = vmatprep.subr.mxu0 0.0
      %566 = vmatpush1.msra.mxu0 0.0
      %567 = vmatprep.mubr.f32.mxu0 0.0
      %568 = vmatmul.mubr.f32.gmra.mrb[0].mxu0 %v497
      %v569 = vpop.f32.mrb[0].mxu0
      %v570 = vadd.f32 0.0, %v569
      %v571 = vpop.f32.mrb[0].mxu0
      %572 = vdwg.mxu0
      %v573 = vlaneseq
      %v574 = vshrl.u32 %v573, 7
      %v575 = vsub.s32 0, %v574
      %v576 = vrot.slane %v570, %v575
      %v577 = vsub.f32 %v391, %v576
      %v578 = vsub.f32 %v396, %v576
      %v579 = vmul.f32 %v577, %v577
      %v580 = vmul.f32 %v578, %v578
      %v581 = vadd.f32 %v579, %v580
      %v582 = vrot.slane %v581, 4
      %v583 = vadd.f32 %v581, %v582
      %v584 = vrot.slane %v583, 2
      %v585 = vadd.f32 %v583, %v584
      %v586 = vrot.slane %v585, 1
      %v587 = vadd.f32 %v585, %v586
      %588 = vmatprep.subr.mxu0 0.0
      %589 = vmatpush1.msra.mxu0 %v399
      %590 = vmatprep.subr.mxu0 0.0
      %591 = vmatpush1.msra.mxu0 %v400
      %592 = vmatprep.subr.mxu0 0.0
      %593 = vmatpush1.msra.mxu0 %v401
      %594 = vmatprep.subr.mxu0 0.0
      %595 = vmatpush1.msra.mxu0 %v402
      %596 = vmatprep.subr.mxu0 0.0
      %597 = vmatpush1.msra.mxu0 %v403
      %598 = vmatprep.subr.mxu0 0.0
      %599 = vmatpush1.msra.mxu0 %v404
      %600 = vmatprep.subr.mxu0 0.0
      %601 = vmatpush1.msra.mxu0 %v405
      %602 = vmatprep.subr.mxu0 0.0
      %603 = vmatpush1.msra.mxu0 %v406
      %604 = vmatprep.subr.mxu0 0.0
      %605 = vmatpush1.msra.mxu0 %v407
      %606 = vmatprep.subr.mxu0 0.0
      %607 = vmatpush1.msra.mxu0 %v408
      %608 = vmatprep.subr.mxu0 0.0
      %609 = vmatpush1.msra.mxu0 %v409
      %610 = vmatprep.subr.mxu0 0.0
      %611 = vmatpush1.msra.mxu0 %v410
      %612 = vmatprep.subr.mxu0 0.0
      %613 = vmatpush1.msra.mxu0 %v411
      %614 = vmatprep.subr.mxu0 0.0
      %615 = vmatpush1.msra.mxu0 %v412
      %616 = vmatprep.subr.mxu0 0.0
      %617 = vmatpush1.msra.mxu0 %v413
      %618 = vmatprep.subr.mxu0 0.0
      %619 = vmatpush1.msra.mxu0 %v414
      %620 = vmatprep.subr.mxu0 0.0
      %621 = vmatpush1.msra.mxu0 0.0
      %622 = vmatprep.subr.mxu0 0.0
      %623 = vmatpush1.msra.mxu0 0.0
      %624 = vmatprep.subr.mxu0 0.0
      %625 = vmatpush1.msra.mxu0 0.0
      %626 = vmatprep.subr.mxu0 0.0
      %627 = vmatpush1.msra.mxu0 0.0
      %628 = vmatprep.subr.mxu0 0.0
      %629 = vmatpush1.msra.mxu0 0.0
      %630 = vmatprep.subr.mxu0 0.0
      %631 = vmatpush1.msra.mxu0 0.0
      %632 = vmatprep.subr.mxu0 0.0
      %633 = vmatpush1.msra.mxu0 0.0
      %634 = vmatprep.subr.mxu0 0.0
      %635 = vmatpush1.msra.mxu0 0.0
      %636 = vmatprep.subr.mxu0 0.0
      %637 = vmatpush1.msra.mxu0 0.0
      %638 = vmatprep.subr.mxu0 0.0
      %639 = vmatpush1.msra.mxu0 0.0
      %640 = vmatprep.subr.mxu0 0.0
      %641 = vmatpush1.msra.mxu0 0.0
      %642 = vmatprep.subr.mxu0 0.0
      %643 = vmatpush1.msra.mxu0 0.0
      %644 = vmatprep.subr.mxu0 0.0
      %645 = vmatpush1.msra.mxu0 0.0
      %646 = vmatprep.subr.mxu0 0.0
      %647 = vmatpush1.msra.mxu0 0.0
      %648 = vmatprep.subr.mxu0 0.0
      %649 = vmatpush1.msra.mxu0 0.0
      %650 = vmatprep.subr.mxu0 0.0
      %651 = vmatpush1.msra.mxu0 0.0
      %652 = vmatprep.mubr.f32.mxu0 0.0
      %653 = vmatmul.mubr.f32.gmra.mrb[0].mxu0 %v587
      %v654 = vpop.f32.mrb[0].mxu0
      %v655 = vadd.f32 0.0, %v654
      %v656 = vpop.f32.mrb[0].mxu0
      %657 = vdwg.mxu0
      %v658 = vmul.f32 %v655, %v493
      %v659 = vadd.f32 %v658, 1e-05
      %v660 = vrsqrt.pop %v659
      %v662 = vsel %vm495, %v660, 0
      %664 = vmatprep.subr.mxu0 0.0
      %665 = vmatpush1.msra.mxu0 %v501
      %666 = vmatprep.subr.mxu0 0.0
      %667 = vmatpush1.msra.mxu0 0.0
      %668 = vmatprep.subr.mxu0 0.0
      %669 = vmatpush1.msra.mxu0 0.0
      %670 = vmatprep.subr.mxu0 0.0
      %671 = vmatpush1.msra.mxu0 0.0
      %672 = vmatprep.subr.mxu0 0.0
      %673 = vmatpush1.msra.mxu0 0.0
      %674 = vmatprep.subr.mxu0 0.0
      %675 = vmatpush1.msra.mxu0 0.0
      %676 = vmatprep.subr.mxu0 0.0
      %677 = vmatpush1.msra.mxu0 0.0
      %678 = vmatprep.subr.mxu0 0.0
      %679 = vmatpush1.msra.mxu0 0.0
      %680 = vmatprep.subr.mxu0 0.0
      %681 = vmatpush1.msra.mxu0 0.0
      %682 = vmatprep.subr.mxu0 0.0
      %683 = vmatpush1.msra.mxu0 0.0
      %684 = vmatprep.subr.mxu0 0.0
      %685 = vmatpush1.msra.mxu0 0.0
      %686 = vmatprep.subr.mxu0 0.0
      %687 = vmatpush1.msra.mxu0 0.0
      %688 = vmatprep.subr.mxu0 0.0
      %689 = vmatpush1.msra.mxu0 0.0
      %690 = vmatprep.subr.mxu0 0.0
      %691 = vmatpush1.msra.mxu0 0.0
      %692 = vmatprep.subr.mxu0 0.0
      %693 = vmatpush1.msra.mxu0 0.0
      %694 = vmatprep.subr.mxu0 0.0
      %695 = vmatpush1.msra.mxu0 0.0
      %696 = vmatprep.subr.mxu0 0.0
      %697 = vmatpush1.msra.mxu0 0.0
      %698 = vmatprep.subr.mxu0 0.0
      %699 = vmatpush1.msra.mxu0 0.0
      %700 = vmatprep.subr.mxu0 0.0
      %701 = vmatpush1.msra.mxu0 0.0
      %702 = vmatprep.subr.mxu0 0.0
      %703 = vmatpush1.msra.mxu0 0.0
      %704 = vmatprep.subr.mxu0 0.0
      %705 = vmatpush1.msra.mxu0 0.0
      %706 = vmatprep.subr.mxu0 0.0
      %707 = vmatpush1.msra.mxu0 0.0
      %708 = vmatprep.subr.mxu0 0.0
      %709 = vmatpush1.msra.mxu0 0.0
      %710 = vmatprep.subr.mxu0 0.0
      %711 = vmatpush1.msra.mxu0 0.0
      %712 = vmatprep.subr.mxu0 0.0
      %713 = vmatpush1.msra.mxu0 0.0
      %714 = vmatprep.subr.mxu0 0.0
      %715 = vmatpush1.msra.mxu0 0.0
      %716 = vmatprep.subr.mxu0 0.0
      %717 = vmatpush1.msra.mxu0 0.0
      %718 = vmatprep.subr.mxu0 0.0
      %719 = vmatpush1.msra.mxu0 0.0
      %720 = vmatprep.subr.mxu0 0.0
      %721 = vmatpush1.msra.mxu0 0.0
      %722 = vmatprep.subr.mxu0 0.0
      %723 = vmatpush1.msra.mxu0 0.0
      %724 = vmatprep.subr.mxu0 0.0
      %725 = vmatpush1.msra.mxu0 0.0
      %726 = vmatprep.subr.mxu0 0.0
      %727 = vmatpush1.msra.mxu0 0.0
      %728 = vmatprep.mubr.f32.mxu0 0.0
      %729 = vmatmul.mubr.f32.gmra.mrb[0].mxu0 %v662
      %v730 = vpop.f32.mrb[0].mxu0
      %v731 = vadd.f32 0.0, %v730
      %v732 = vpop.f32.mrb[0].mxu0
      %733 = vdwg.mxu0
      %v734 = vlaneseq
      %v735 = vshrl.u32 %v734, 7
      %v736 = vsub.s32 0, %v735
      %v737 = vrot.slane %v731, %v736
      %v738 = vmul.f32 %v577, %v737
      %v739 = vmul.f32 %v578, %v737
      %v740 = vld [vmem:[%s3] sm:$0x1]
      %v742 = vlaneseq
      %v743 = vshrl.u32 %v742, 7
      %v744 = vsub.s32 0, %v743
      %v745 = vrot.slane %v740, %v744
      %v747 = vmul.f32 %v738, %v745
      %v748 = vmul.f32 %v739, %v745
      %v749 = vld [vmem:[%s4] sm:$0x1]
      %v751 = vlaneseq
      %v752 = vshrl.u32 %v751, 7
      %v753 = vsub.s32 0, %v752
      %v754 = vrot.slane %v749, %v753
      %v756 = vadd.f32 %v747, %v754
      %v757 = vadd.f32 %v748, %v754
      %v758 = vmul.f32 %v756, 0.5
      %v759 = vmul.f32 %v757, 0.5
      %v760 = vmul.f32 %v756, 0.70710677
      %v761 = vmul.f32 %v757, 0.70710677
      %v762 = verf.f32.pop %v760
      %v763 = verf.f32.pop %v761
      %v764 = vadd.f32 %v762, 1.0
      %v765 = vadd.f32 %v763, 1.0
      %v766 = vmul.f32 %v758, %v764
      %v767 = vmul.f32 %v759, %v765
      %768 = vst [vmem:[%s278] sm:$0xff] %v766
      %769 = vst [vmem:[%s278 + $0x8] sm:$0xff] %v767
      %p770 = scmp.lt.s32.totalorder %s18, 1
      %s771 = scalar_select %p770, %s18, 1
      %s772 = smul.addr %s771, 2
      %s773 = smul.addr %s772, 8
      %s774 = scalar_lea.vmem %s7, %s773
      // Predicated region
      $region49: #{gelu_conv_block.1} parent=47 // pred_check
        %p775 = pneg %p188
      $region50: #{gelu_conv_block.1} parent=47 // pred_check_branch
        %777 = sbr.rel (%p775) target = $region52
      $region51: #{gelu_conv_block.1} parent=47 // pred_region
        _
      $region52: #{gelu_conv_block.1} parent=47 // pred_fallthru
        _
    $region48: #{gelu_conv_block.1} parent=5 // pred_fallthru
      _
    %p778 = scmp.le.s32.totalorder 2, %s13
    // Predicated region
    $region53: #{gelu_conv_block.1} parent=5 // pred_check
      %p779 = pneg %p778
    $region54: #{gelu_conv_block.1} parent=5 // pred_check_branch
      %781 = sbr.rel (%p779) target = $region56
    $region55: #{gelu_conv_block.1} parent=5 // pred_region
      %s782 = ssub.s32 %s13, 2
      // Predicated region
      $region57: #{gelu_conv_block.1} parent=55 // pred_check
        %p783 = pneg %p194
      $region58: #{gelu_conv_block.1} parent=55 // pred_check_branch
        %785 = sbr.rel (%p783) target = $region60
      $region59: #{gelu_conv_block.1} parent=55 // pred_region
        %p786 = scmp.lt.s32.totalorder %s19, 1
        %s787 = scalar_select %p786, %s19, 1
        %s788 = smul.addr %s787, 2
        %s789 = smul.addr %s788, 8
        %s790 = scalar_lea.vmem %s7, %s789
      $region60: #{gelu_conv_block.1} parent=55 // pred_fallthru
        _
    $region56: #{gelu_conv_block.1} parent=5 // pred_fallthru
      _
  $region6: #{gelu_conv_block.1} parent=0 // loop_footer
    %s17 = sadd.s32 1, %s13
  $region7: #{gelu_conv_block.1} parent=0 // loop_footer_branch
    %12 = sbr.rel target = $region3
  $region8: #{gelu_conv_block.1} parent=0 // loop_exit
    _

</llo_original>
